<compile_context>
chip_gen: v5e
topology: v5e:2x2
jax: 0.10.0
libtpu: 0.0.40
codegen_flags: <defaults>
</compile_context>

<pallas_src>
import jax
import jax.numpy as jnp
from jax.experimental import pallas as pl
from jax.experimental.pallas import tpu as pltpu

_LANE_OUT = 128  # lane-dense output slab width


def cost_critic_kernel(x_ref, w_ih_t_ref, w_hh_t_ref, b_ref,
                       w1_ref, b1_ref, w2_row_ref, b2_ref, out_ref):
    """LSTM over time + MLP value head, fully resident in VMEM.

    x_ref     : (T, Bb, D)  time-major input sequence block (f32)
    w_ih_t_ref: (D, 4H)     input->gates weights, g-gate cols pre-scaled x2 (bf16)
    w_hh_t_ref: (H, 4H)     hidden->gates weights, g-gate cols pre-scaled x2 (bf16)
    b_ref     : (1, 4H)     combined gate bias (b_ih + b_hh), g cols x2 (f32)
    w1_ref    : (H, M)      value-head layer 1 weights (bf16)
    b1_ref    : (1, M)      (f32)
    w2_row_ref: (1, M)      value-head layer 2 weights as a row (f32)
    b2_ref    : (1, 1)      (f32)
    out_ref   : (Bb, 128)   lane-dense output slab; column 0 is the value
    """
    T, Bb, D = x_ref.shape
    H = w_hh_t_ref.shape[0]

    # ---- Input projection for ALL timesteps at once (bf16 MXU, f32 acc) ----
    x_flat = x_ref[...].reshape(T * Bb, D).astype(jnp.bfloat16)   # (T*Bb, D)
    xw = (jnp.dot(x_flat, w_ih_t_ref[...],
                  preferred_element_type=jnp.float32)
          + b_ref[...])                                           # (T*Bb, 4H) f32
    xw = xw.reshape(T, Bb, 4 * H)                                 # time-major slab

    w_hh_t = w_hh_t_ref[...]                                      # hoisted (bf16)

    h = jnp.zeros((Bb, H), jnp.float32)
    c = jnp.zeros((Bb, H), jnp.float32)

    # T is small and static -> full static unroll (LLO scheduling visibility).
    for t in range(T):
        # Only the hidden->gates matmul stays on the serial path (bf16 MXU).
        gates = xw[t] + jnp.dot(h.astype(jnp.bfloat16), w_hh_t,
                                preferred_element_type=jnp.float32)  # (Bb, 4H)
        # Single sigmoid slab push; g gate recovered as tanh via 2*sig(2x)-1
        # (the x2 is folded into the g-gate weight/bias columns in the wrapper).
        sig = jax.nn.sigmoid(gates)                               # EUP push 1
        i_g = sig[:, 0 * H:1 * H]
        f_g = sig[:, 1 * H:2 * H]
        g_g = 2.0 * sig[:, 2 * H:3 * H] - 1.0                     # tanh(g_pre)
        o_g = sig[:, 3 * H:4 * H]
        c = f_g * c + i_g * g_g
        h = o_g * jnp.tanh(c)                                     # EUP push 2

    # ---- Cost value head: Linear -> ReLU -> (mul + lane reduce) ----
    hidden = jnp.maximum(
        jnp.dot(h.astype(jnp.bfloat16), w1_ref[...],
                preferred_element_type=jnp.float32) + b1_ref[...],
        0.0)                                                      # (Bb, M)
    value = (jnp.sum(hidden * w2_row_ref[...], axis=-1, keepdims=True)
             + b2_ref[...])                                       # (Bb, 1)

    # Lane-dense store (unmasked vst); wrapper slices column 0.
    out_ref[...] = jnp.broadcast_to(value, out_ref.shape).astype(out_ref.dtype)


def cost_critic_forward(s, params, *, block_b=None):
    B, T, D = s.shape
    H = params["w_hh_t"].shape[0]
    M = params["w1"].shape[1]
    G = 4 * H

    # Pad batch to a multiple of 8 sublane rows (full vreg rows, unmasked
    # output stores).  Padded rows are zeros and discarded by the final slice.
    B_pad = max(8, -(-B // 8) * 8)
    if B_pad != B:
        s = jnp.pad(s, ((0, B_pad - B), (0, 0), (0, 0)))

    # Time-major layout so xw[t] inside the kernel is a zero-cost leading-axis
    # view (free layout plumbing in XLA, not in-kernel compute).
    s_tm = jnp.transpose(s, (1, 0, 2))                            # (T, B_pad, D)

    # Single grid step per call on single-TC chips (v5e/v6e).  Only shard the
    # batch across TensorCores (block_b < B_pad) when each shard keeps >= 8
    # useful sublane rows (e.g. v7x with B_pad >= 16).
    if block_b is None:
        block_b = B_pad
    assert block_b == B_pad or (block_b % 8 == 0 and B_pad % block_b == 0), (
        "block_b must equal the padded batch or be a multiple of 8 that "
        "divides it")
    grid = (B_pad // block_b,)

    in_specs = [
        pl.BlockSpec((T, block_b, D), lambda i: (0, i, 0)),   # x (time-major)
        pl.BlockSpec((D, G),          lambda i: (0, 0)),      # w_ih_t (bf16, resident)
        pl.BlockSpec((H, G),          lambda i: (0, 0)),      # w_hh_t (bf16, resident)
        pl.BlockSpec((1, G),          lambda i: (0, 0)),      # b
        pl.BlockSpec((H, M),          lambda i: (0, 0)),      # w1 (bf16)
        pl.BlockSpec((1, M),          lambda i: (0, 0)),      # b1
        pl.BlockSpec((1, M),          lambda i: (0, 0)),      # w2 row
        pl.BlockSpec((1, 1),          lambda i: (0, 0)),      # b2
    ]
    out_spec = pl.BlockSpec((block_b, _LANE_OUT), lambda i: (i, 0))

    out_padded = pl.pallas_call(
        cost_critic_kernel,
        out_shape=jax.ShapeDtypeStruct((B_pad, _LANE_OUT), jnp.float32),
        grid=grid,
        in_specs=in_specs,
        out_specs=out_spec,
        compiler_params=pltpu.CompilerParams(
            dimension_semantics=("parallel",)),
    )(s_tm, params["w_ih_t"], params["w_hh_t"], params["b"],
      params["w1"], params["b1"], params["w2_row"], params["b2"])

    return out_padded[:B, :1]                                   # (B, 1)


def prepare_params(w_ih, w_hh, b_ih, b_hh, w1, b1, w2, b2):
    """Pre-transpose / pre-scale / pre-cast weights for the kernel."""
    H = w_hh.shape[1]
    M = w1.shape[0]
    # Fold x2 into the g-gate rows (PyTorch gate order i, f, g, o) so the
    # kernel can use a single sigmoid slab and recover tanh as 2*sig-1.
    g_scale = jnp.ones((4 * H,), jnp.float32).at[2 * H:3 * H].set(2.0)
    return dict(
        w_ih_t=jnp.transpose(w_ih * g_scale[:, None]).astype(jnp.bfloat16),  # (D, 4H)
        w_hh_t=jnp.transpose(w_hh * g_scale[:, None]).astype(jnp.bfloat16),  # (H, 4H)
        b=((b_ih + b_hh) * g_scale).reshape(1, 4 * H),                       # (1, 4H) f32
        w1=jnp.transpose(w1).astype(jnp.bfloat16),                           # (H, M)
        b1=b1.reshape(1, M),                                                 # (1, M)
        w2_row=w2.reshape(1, M),                                             # (1, M)
        b2=b2.reshape(1, 1),                                                 # (1, 1)
    )


def reference_forward(s, w_ih, w_hh, b_ih, b_hh, w1, b1, w2, b2):
    """Pure-JAX f32 reference matching PyTorch semantics."""
    B, T, D = s.shape
    H = w_hh.shape[1]
    h = jnp.zeros((B, H), jnp.float32)
    c = jnp.zeros((B, H), jnp.float32)
    for t in range(T):
        gates = s[:, t, :] @ w_ih.T + h @ w_hh.T + b_ih + b_hh
        i_g = jax.nn.sigmoid(gates[:, 0 * H:1 * H])
        f_g = jax.nn.sigmoid(gates[:, 1 * H:2 * H])
        g_g = jnp.tanh(gates[:, 2 * H:3 * H])
        o_g = jax.nn.sigmoid(gates[:, 3 * H:4 * H])
        c = f_g * c + i_g * g_g
        h = o_g * jnp.tanh(c)
    hidden = jnp.maximum(h @ w1.T + b1, 0.0)
    return hidden @ w2.T + b2


if __name__ == "__main__":
    B, T, D, H, M = 2, 8, 16, 32, 32   # batch, seq, state_dim, lstm_hidden, head_hidden

    key = jax.random.PRNGKey(0)
    ks = jax.random.split(key, 10)
    s_in = jax.random.normal(ks[0], (B, T, D), jnp.float32)

    # Deterministic init following PyTorch default uniform(-1/sqrt(fan), 1/sqrt(fan))
    lstm_s = 1.0 / jnp.sqrt(jnp.float32(H))
    w_ih = jax.random.uniform(ks[1], (4 * H, D), jnp.float32, -lstm_s, lstm_s)
    w_hh = jax.random.uniform(ks[2], (4 * H, H), jnp.float32, -lstm_s, lstm_s)
    b_ih = jax.random.uniform(ks[3], (4 * H,), jnp.float32, -lstm_s, lstm_s)
    b_hh = jax.random.uniform(ks[4], (4 * H,), jnp.float32, -lstm_s, lstm_s)

    l1_s = 1.0 / jnp.sqrt(jnp.float32(H))
    w1 = jax.random.uniform(ks[5], (M, H), jnp.float32, -l1_s, l1_s)
    b1 = jax.random.uniform(ks[6], (M,), jnp.float32, -l1_s, l1_s)

    l2_s = 1.0 / jnp.sqrt(jnp.float32(M))
    w2 = jax.random.uniform(ks[7], (1, M), jnp.float32, -l2_s, l2_s)
    b2 = jax.random.uniform(ks[8], (1,), jnp.float32, -l2_s, l2_s)

    params = prepare_params(w_ih, w_hh, b_ih, b_hh, w1, b1, w2, b2)

    value = cost_critic_forward(s_in, params)
    jax.block_until_ready(value)

    ref = reference_forward(s_in, w_ih, w_hh, b_ih, b_hh, w1, b1, w2, b2)
    assert value.shape == (B, 1)
    # bf16 MXU operands -> tolerance loosened vs the f32 reference.
    assert jnp.allclose(value, ref, atol=2e-2, rtol=2e-2), (value, ref)

    print("KERNEL_OK")
</pallas_src>

<mosaic_0001>
module attributes {stable_mosaic.version = 11 : i64} {
  func.func @cost_critic_kernel(%arg0: i32, %arg1: memref<8x8x16xf32, #tpu.memory_space<vmem>>, %arg2: memref<16x128xbf16, #tpu.memory_space<vmem>>, %arg3: memref<32x128xbf16, #tpu.memory_space<vmem>>, %arg4: memref<1x128xf32, #tpu.memory_space<vmem>>, %arg5: memref<32x32xbf16, #tpu.memory_space<vmem>>, %arg6: memref<1x32xf32, #tpu.memory_space<vmem>>, %arg7: memref<1x32xf32, #tpu.memory_space<vmem>>, %arg8: memref<1x1xf32, #tpu.memory_space<vmem>>, %arg9: memref<8x128xf32, #tpu.memory_space<vmem>>) attributes {dimension_semantics = [#tpu.dimension_semantics<parallel>], iteration_bounds = array<i64: 1>, scalar_prefetch = 0 : i64, scratch_operands = 0 : i64, tpu.core_type = #tpu.core_type<tc>, window_params = [{transform_indices = @transform_0, window_bounds = array<i64: 8, 8, 16>}, {pipeline_mode = #tpu.pipeline_mode<synchronous>, transform_indices = @transform_1, window_bounds = array<i64: 16, 128>}, {pipeline_mode = #tpu.pipeline_mode<synchronous>, transform_indices = @transform_2, window_bounds = array<i64: 32, 128>}, {pipeline_mode = #tpu.pipeline_mode<synchronous>, transform_indices = @transform_3, window_bounds = array<i64: 1, 128>}, {pipeline_mode = #tpu.pipeline_mode<synchronous>, transform_indices = @transform_4, window_bounds = array<i64: 32, 32>}, {pipeline_mode = #tpu.pipeline_mode<synchronous>, transform_indices = @transform_5, window_bounds = array<i64: 1, 32>}, {pipeline_mode = #tpu.pipeline_mode<synchronous>, transform_indices = @transform_6, window_bounds = array<i64: 1, 32>}, {pipeline_mode = #tpu.pipeline_mode<synchronous>, transform_indices = @transform_7, window_bounds = array<i64: 1, 1>}, {transform_indices = @transform_8, window_bounds = array<i64: 8, 128>}]} {
    %c0 = arith.constant 0 : index
    %c0_0 = arith.constant 0 : index
    %c0_1 = arith.constant 0 : index
    %0 = vector.load %arg1[%c0, %c0_0, %c0_1] : memref<8x8x16xf32, #tpu.memory_space<vmem>>, vector<8x8x16xf32>
    %1 = vector.shape_cast %0 : vector<8x8x16xf32> to vector<64x16xf32>
    %2 = arith.truncf %1 : vector<64x16xf32> to vector<64x16xbf16>
    %c0_2 = arith.constant 0 : index
    %c0_3 = arith.constant 0 : index
    %3 = vector.load %arg2[%c0_2, %c0_3] : memref<16x128xbf16, #tpu.memory_space<vmem>>, vector<16x128xbf16>
    %cst = arith.constant dense<0.000000e+00> : vector<64x128xf32>
    %4 = tpu.matmul %2, %3, %cst {dimension_numbers = #tpu.dot_dimension_numbers<[1], [0], [0], [1], [0, 0, 1, 1], [], []>} : vector<64x16xbf16>, vector<16x128xbf16>, vector<64x128xf32> -> vector<64x128xf32>
    %c0_4 = arith.constant 0 : index
    %c0_5 = arith.constant 0 : index
    %5 = vector.load %arg4[%c0_4, %c0_5] : memref<1x128xf32, #tpu.memory_space<vmem>>, vector<1x128xf32>
    %6 = vector.broadcast %5 : vector<1x128xf32> to vector<64x128xf32>
    %7 = arith.addf %4, %6 : vector<64x128xf32>
    %8 = vector.shape_cast %7 : vector<64x128xf32> to vector<8x8x128xf32>
    %c0_6 = arith.constant 0 : index
    %c0_7 = arith.constant 0 : index
    %9 = vector.load %arg3[%c0_6, %c0_7] : memref<32x128xbf16, #tpu.memory_space<vmem>>, vector<32x128xbf16>
    %cst_8 = arith.constant 0.000000e+00 : f32
    %10 = vector.broadcast %cst_8 : f32 to vector<8x32xf32>
    %cst_9 = arith.constant 0.000000e+00 : f32
    %11 = vector.broadcast %cst_9 : f32 to vector<8x32xf32>
    %12 = vector.extract_strided_slice %8 {offsets = [0, 0, 0], sizes = [1, 8, 128], strides = [1, 1, 1]} : vector<8x8x128xf32> to vector<1x8x128xf32>
    %13 = vector.shape_cast %12 : vector<1x8x128xf32> to vector<8x128xf32>
    %14 = arith.truncf %10 : vector<8x32xf32> to vector<8x32xbf16>
    %cst_10 = arith.constant dense<0.000000e+00> : vector<8x128xf32>
    %15 = tpu.matmul %14, %9, %cst_10 {dimension_numbers = #tpu.dot_dimension_numbers<[1], [0], [0], [1], [0, 0, 1, 1], [], []>} : vector<8x32xbf16>, vector<32x128xbf16>, vector<8x128xf32> -> vector<8x128xf32>
    %16 = arith.addf %13, %15 : vector<8x128xf32>
    %17 = arith.negf %16 : vector<8x128xf32>
    %18 = math.exp %17 : vector<8x128xf32>
    %cst_11 = arith.constant 1.000000e+00 : f32
    %19 = vector.broadcast %cst_11 : f32 to vector<8x128xf32>
    %20 = arith.addf %19, %18 : vector<8x128xf32>
    %21 = arith.divf %19, %20 : vector<8x128xf32>
    %22 = vector.extract_strided_slice %21 {offsets = [0, 0], sizes = [8, 32], strides = [1, 1]} : vector<8x128xf32> to vector<8x32xf32>
    %23 = vector.extract_strided_slice %21 {offsets = [0, 32], sizes = [8, 32], strides = [1, 1]} : vector<8x128xf32> to vector<8x32xf32>
    %24 = vector.extract_strided_slice %21 {offsets = [0, 64], sizes = [8, 32], strides = [1, 1]} : vector<8x128xf32> to vector<8x32xf32>
    %cst_12 = arith.constant 2.000000e+00 : f32
    %25 = vector.broadcast %cst_12 : f32 to vector<8x32xf32>
    %26 = arith.mulf %25, %24 : vector<8x32xf32>
    %cst_13 = arith.constant 1.000000e+00 : f32
    %27 = vector.broadcast %cst_13 : f32 to vector<8x32xf32>
    %28 = arith.subf %26, %27 : vector<8x32xf32>
    %29 = vector.extract_strided_slice %21 {offsets = [0, 96], sizes = [8, 32], strides = [1, 1]} : vector<8x128xf32> to vector<8x32xf32>
    %30 = arith.mulf %23, %11 : vector<8x32xf32>
    %31 = arith.mulf %22, %28 : vector<8x32xf32>
    %32 = arith.addf %30, %31 : vector<8x32xf32>
    %33 = math.tanh %32 : vector<8x32xf32>
    %34 = arith.mulf %29, %33 : vector<8x32xf32>
    %35 = vector.extract_strided_slice %8 {offsets = [1, 0, 0], sizes = [1, 8, 128], strides = [1, 1, 1]} : vector<8x8x128xf32> to vector<1x8x128xf32>
    %36 = vector.shape_cast %35 : vector<1x8x128xf32> to vector<8x128xf32>
    %37 = arith.truncf %34 : vector<8x32xf32> to vector<8x32xbf16>
    %cst_14 = arith.constant dense<0.000000e+00> : vector<8x128xf32>
    %38 = tpu.matmul %37, %9, %cst_14 {dimension_numbers = #tpu.dot_dimension_numbers<[1], [0], [0], [1], [0, 0, 1, 1], [], []>} : vector<8x32xbf16>, vector<32x128xbf16>, vector<8x128xf32> -> vector<8x128xf32>
    %39 = arith.addf %36, %38 : vector<8x128xf32>
    %40 = arith.negf %39 : vector<8x128xf32>
    %41 = math.exp %40 : vector<8x128xf32>
    %cst_15 = arith.constant 1.000000e+00 : f32
    %42 = vector.broadcast %cst_15 : f32 to vector<8x128xf32>
    %43 = arith.addf %42, %41 : vector<8x128xf32>
    %44 = arith.divf %42, %43 : vector<8x128xf32>
    %45 = vector.extract_strided_slice %44 {offsets = [0, 0], sizes = [8, 32], strides = [1, 1]} : vector<8x128xf32> to vector<8x32xf32>
    %46 = vector.extract_strided_slice %44 {offsets = [0, 32], sizes = [8, 32], strides = [1, 1]} : vector<8x128xf32> to vector<8x32xf32>
    %47 = vector.extract_strided_slice %44 {offsets = [0, 64], sizes = [8, 32], strides = [1, 1]} : vector<8x128xf32> to vector<8x32xf32>
    %cst_16 = arith.constant 2.000000e+00 : f32
    %48 = vector.broadcast %cst_16 : f32 to vector<8x32xf32>
    %49 = arith.mulf %48, %47 : vector<8x32xf32>
    %cst_17 = arith.constant 1.000000e+00 : f32
    %50 = vector.broadcast %cst_17 : f32 to vector<8x32xf32>
    %51 = arith.subf %49, %50 : vector<8x32xf32>
    %52 = vector.extract_strided_slice %44 {offsets = [0, 96], sizes = [8, 32], strides = [1, 1]} : vector<8x128xf32> to vector<8x32xf32>
    %53 = arith.mulf %46, %32 : vector<8x32xf32>
    %54 = arith.mulf %45, %51 : vector<8x32xf32>
    %55 = arith.addf %53, %54 : vector<8x32xf32>
    %56 = math.tanh %55 : vector<8x32xf32>
    %57 = arith.mulf %52, %56 : vector<8x32xf32>
    %58 = vector.extract_strided_slice %8 {offsets = [2, 0, 0], sizes = [1, 8, 128], strides = [1, 1, 1]} : vector<8x8x128xf32> to vector<1x8x128xf32>
    %59 = vector.shape_cast %58 : vector<1x8x128xf32> to vector<8x128xf32>
    %60 = arith.truncf %57 : vector<8x32xf32> to vector<8x32xbf16>
    %cst_18 = arith.constant dense<0.000000e+00> : vector<8x128xf32>
    %61 = tpu.matmul %60, %9, %cst_18 {dimension_numbers = #tpu.dot_dimension_numbers<[1], [0], [0], [1], [0, 0, 1, 1], [], []>} : vector<8x32xbf16>, vector<32x128xbf16>, vector<8x128xf32> -> vector<8x128xf32>
    %62 = arith.addf %59, %61 : vector<8x128xf32>
    %63 = arith.negf %62 : vector<8x128xf32>
    %64 = math.exp %63 : vector<8x128xf32>
    %cst_19 = arith.constant 1.000000e+00 : f32
    %65 = vector.broadcast %cst_19 : f32 to vector<8x128xf32>
    %66 = arith.addf %65, %64 : vector<8x128xf32>
    %67 = arith.divf %65, %66 : vector<8x128xf32>
    %68 = vector.extract_strided_slice %67 {offsets = [0, 0], sizes = [8, 32], strides = [1, 1]} : vector<8x128xf32> to vector<8x32xf32>
    %69 = vector.extract_strided_slice %67 {offsets = [0, 32], sizes = [8, 32], strides = [1, 1]} : vector<8x128xf32> to vector<8x32xf32>
    %70 = vector.extract_strided_slice %67 {offsets = [0, 64], sizes = [8, 32], strides = [1, 1]} : vector<8x128xf32> to vector<8x32xf32>
    %cst_20 = arith.constant 2.000000e+00 : f32
    %71 = vector.broadcast %cst_20 : f32 to vector<8x32xf32>
    %72 = arith.mulf %71, %70 : vector<8x32xf32>
    %cst_21 = arith.constant 1.000000e+00 : f32
    %73 = vector.broadcast %cst_21 : f32 to vector<8x32xf32>
    %74 = arith.subf %72, %73 : vector<8x32xf32>
    %75 = vector.extract_strided_slice %67 {offsets = [0, 96], sizes = [8, 32], strides = [1, 1]} : vector<8x128xf32> to vector<8x32xf32>
    %76 = arith.mulf %69, %55 : vector<8x32xf32>
    %77 = arith.mulf %68, %74 : vector<8x32xf32>
    %78 = arith.addf %76, %77 : vector<8x32xf32>
    %79 = math.tanh %78 : vector<8x32xf32>
    %80 = arith.mulf %75, %79 : vector<8x32xf32>
    %81 = vector.extract_strided_slice %8 {offsets = [3, 0, 0], sizes = [1, 8, 128], strides = [1, 1, 1]} : vector<8x8x128xf32> to vector<1x8x128xf32>
    %82 = vector.shape_cast %81 : vector<1x8x128xf32> to vector<8x128xf32>
    %83 = arith.truncf %80 : vector<8x32xf32> to vector<8x32xbf16>
    %cst_22 = arith.constant dense<0.000000e+00> : vector<8x128xf32>
    %84 = tpu.matmul %83, %9, %cst_22 {dimension_numbers = #tpu.dot_dimension_numbers<[1], [0], [0], [1], [0, 0, 1, 1], [], []>} : vector<8x32xbf16>, vector<32x128xbf16>, vector<8x128xf32> -> vector<8x128xf32>
    %85 = arith.addf %82, %84 : vector<8x128xf32>
    %86 = arith.negf %85 : vector<8x128xf32>
    %87 = math.exp %86 : vector<8x128xf32>
    %cst_23 = arith.constant 1.000000e+00 : f32
    %88 = vector.broadcast %cst_23 : f32 to vector<8x128xf32>
    %89 = arith.addf %88, %87 : vector<8x128xf32>
    %90 = arith.divf %88, %89 : vector<8x128xf32>
    %91 = vector.extract_strided_slice %90 {offsets = [0, 0], sizes = [8, 32], strides = [1, 1]} : vector<8x128xf32> to vector<8x32xf32>
    %92 = vector.extract_strided_slice %90 {offsets = [0, 32], sizes = [8, 32], strides = [1, 1]} : vector<8x128xf32> to vector<8x32xf32>
    %93 = vector.extract_strided_slice %90 {offsets = [0, 64], sizes = [8, 32], strides = [1, 1]} : vector<8x128xf32> to vector<8x32xf32>
    %cst_24 = arith.constant 2.000000e+00 : f32
    %94 = vector.broadcast %cst_24 : f32 to vector<8x32xf32>
    %95 = arith.mulf %94, %93 : vector<8x32xf32>
    %cst_25 = arith.constant 1.000000e+00 : f32
    %96 = vector.broadcast %cst_25 : f32 to vector<8x32xf32>
    %97 = arith.subf %95, %96 : vector<8x32xf32>
    %98 = vector.extract_strided_slice %90 {offsets = [0, 96], sizes = [8, 32], strides = [1, 1]} : vector<8x128xf32> to vector<8x32xf32>
    %99 = arith.mulf %92, %78 : vector<8x32xf32>
    %100 = arith.mulf %91, %97 : vector<8x32xf32>
    %101 = arith.addf %99, %100 : vector<8x32xf32>
    %102 = math.tanh %101 : vector<8x32xf32>
    %103 = arith.mulf %98, %102 : vector<8x32xf32>
    %104 = vector.extract_strided_slice %8 {offsets = [4, 0, 0], sizes = [1, 8, 128], strides = [1, 1, 1]} : vector<8x8x128xf32> to vector<1x8x128xf32>
    %105 = vector.shape_cast %104 : vector<1x8x128xf32> to vector<8x128xf32>
    %106 = arith.truncf %103 : vector<8x32xf32> to vector<8x32xbf16>
    %cst_26 = arith.constant dense<0.000000e+00> : vector<8x128xf32>
    %107 = tpu.matmul %106, %9, %cst_26 {dimension_numbers = #tpu.dot_dimension_numbers<[1], [0], [0], [1], [0, 0, 1, 1], [], []>} : vector<8x32xbf16>, vector<32x128xbf16>, vector<8x128xf32> -> vector<8x128xf32>
    %108 = arith.addf %105, %107 : vector<8x128xf32>
    %109 = arith.negf %108 : vector<8x128xf32>
    %110 = math.exp %109 : vector<8x128xf32>
    %cst_27 = arith.constant 1.000000e+00 : f32
    %111 = vector.broadcast %cst_27 : f32 to vector<8x128xf32>
    %112 = arith.addf %111, %110 : vector<8x128xf32>
    %113 = arith.divf %111, %112 : vector<8x128xf32>
    %114 = vector.extract_strided_slice %113 {offsets = [0, 0], sizes = [8, 32], strides = [1, 1]} : vector<8x128xf32> to vector<8x32xf32>
    %115 = vector.extract_strided_slice %113 {offsets = [0, 32], sizes = [8, 32], strides = [1, 1]} : vector<8x128xf32> to vector<8x32xf32>
    %116 = vector.extract_strided_slice %113 {offsets = [0, 64], sizes = [8, 32], strides = [1, 1]} : vector<8x128xf32> to vector<8x32xf32>
    %cst_28 = arith.constant 2.000000e+00 : f32
    %117 = vector.broadcast %cst_28 : f32 to vector<8x32xf32>
    %118 = arith.mulf %117, %116 : vector<8x32xf32>
    %cst_29 = arith.constant 1.000000e+00 : f32
    %119 = vector.broadcast %cst_29 : f32 to vector<8x32xf32>
    %120 = arith.subf %118, %119 : vector<8x32xf32>
    %121 = vector.extract_strided_slice %113 {offsets = [0, 96], sizes = [8, 32], strides = [1, 1]} : vector<8x128xf32> to vector<8x32xf32>
    %122 = arith.mulf %115, %101 : vector<8x32xf32>
    %123 = arith.mulf %114, %120 : vector<8x32xf32>
    %124 = arith.addf %122, %123 : vector<8x32xf32>
    %125 = math.tanh %124 : vector<8x32xf32>
    %126 = arith.mulf %121, %125 : vector<8x32xf32>
    %127 = vector.extract_strided_slice %8 {offsets = [5, 0, 0], sizes = [1, 8, 128], strides = [1, 1, 1]} : vector<8x8x128xf32> to vector<1x8x128xf32>
    %128 = vector.shape_cast %127 : vector<1x8x128xf32> to vector<8x128xf32>
    %129 = arith.truncf %126 : vector<8x32xf32> to vector<8x32xbf16>
    %cst_30 = arith.constant dense<0.000000e+00> : vector<8x128xf32>
    %130 = tpu.matmul %129, %9, %cst_30 {dimension_numbers = #tpu.dot_dimension_numbers<[1], [0], [0], [1], [0, 0, 1, 1], [], []>} : vector<8x32xbf16>, vector<32x128xbf16>, vector<8x128xf32> -> vector<8x128xf32>
    %131 = arith.addf %128, %130 : vector<8x128xf32>
    %132 = arith.negf %131 : vector<8x128xf32>
    %133 = math.exp %132 : vector<8x128xf32>
    %cst_31 = arith.constant 1.000000e+00 : f32
    %134 = vector.broadcast %cst_31 : f32 to vector<8x128xf32>
    %135 = arith.addf %134, %133 : vector<8x128xf32>
    %136 = arith.divf %134, %135 : vector<8x128xf32>
    %137 = vector.extract_strided_slice %136 {offsets = [0, 0], sizes = [8, 32], strides = [1, 1]} : vector<8x128xf32> to vector<8x32xf32>
    %138 = vector.extract_strided_slice %136 {offsets = [0, 32], sizes = [8, 32], strides = [1, 1]} : vector<8x128xf32> to vector<8x32xf32>
    %139 = vector.extract_strided_slice %136 {offsets = [0, 64], sizes = [8, 32], strides = [1, 1]} : vector<8x128xf32> to vector<8x32xf32>
    %cst_32 = arith.constant 2.000000e+00 : f32
    %140 = vector.broadcast %cst_32 : f32 to vector<8x32xf32>
    %141 = arith.mulf %140, %139 : vector<8x32xf32>
    %cst_33 = arith.constant 1.000000e+00 : f32
    %142 = vector.broadcast %cst_33 : f32 to vector<8x32xf32>
    %143 = arith.subf %141, %142 : vector<8x32xf32>
    %144 = vector.extract_strided_slice %136 {offsets = [0, 96], sizes = [8, 32], strides = [1, 1]} : vector<8x128xf32> to vector<8x32xf32>
    %145 = arith.mulf %138, %124 : vector<8x32xf32>
    %146 = arith.mulf %137, %143 : vector<8x32xf32>
    %147 = arith.addf %145, %146 : vector<8x32xf32>
    %148 = math.tanh %147 : vector<8x32xf32>
    %149 = arith.mulf %144, %148 : vector<8x32xf32>
    %150 = vector.extract_strided_slice %8 {offsets = [6, 0, 0], sizes = [1, 8, 128], strides = [1, 1, 1]} : vector<8x8x128xf32> to vector<1x8x128xf32>
    %151 = vector.shape_cast %150 : vector<1x8x128xf32> to vector<8x128xf32>
    %152 = arith.truncf %149 : vector<8x32xf32> to vector<8x32xbf16>
    %cst_34 = arith.constant dense<0.000000e+00> : vector<8x128xf32>
    %153 = tpu.matmul %152, %9, %cst_34 {dimension_numbers = #tpu.dot_dimension_numbers<[1], [0], [0], [1], [0, 0, 1, 1], [], []>} : vector<8x32xbf16>, vector<32x128xbf16>, vector<8x128xf32> -> vector<8x128xf32>
    %154 = arith.addf %151, %153 : vector<8x128xf32>
    %155 = arith.negf %154 : vector<8x128xf32>
    %156 = math.exp %155 : vector<8x128xf32>
    %cst_35 = arith.constant 1.000000e+00 : f32
    %157 = vector.broadcast %cst_35 : f32 to vector<8x128xf32>
    %158 = arith.addf %157, %156 : vector<8x128xf32>
    %159 = arith.divf %157, %158 : vector<8x128xf32>
    %160 = vector.extract_strided_slice %159 {offsets = [0, 0], sizes = [8, 32], strides = [1, 1]} : vector<8x128xf32> to vector<8x32xf32>
    %161 = vector.extract_strided_slice %159 {offsets = [0, 32], sizes = [8, 32], strides = [1, 1]} : vector<8x128xf32> to vector<8x32xf32>
    %162 = vector.extract_strided_slice %159 {offsets = [0, 64], sizes = [8, 32], strides = [1, 1]} : vector<8x128xf32> to vector<8x32xf32>
    %cst_36 = arith.constant 2.000000e+00 : f32
    %163 = vector.broadcast %cst_36 : f32 to vector<8x32xf32>
    %164 = arith.mulf %163, %162 : vector<8x32xf32>
    %cst_37 = arith.constant 1.000000e+00 : f32
    %165 = vector.broadcast %cst_37 : f32 to vector<8x32xf32>
    %166 = arith.subf %164, %165 : vector<8x32xf32>
    %167 = vector.extract_strided_slice %159 {offsets = [0, 96], sizes = [8, 32], strides = [1, 1]} : vector<8x128xf32> to vector<8x32xf32>
    %168 = arith.mulf %161, %147 : vector<8x32xf32>
    %169 = arith.mulf %160, %166 : vector<8x32xf32>
    %170 = arith.addf %168, %169 : vector<8x32xf32>
    %171 = math.tanh %170 : vector<8x32xf32>
    %172 = arith.mulf %167, %171 : vector<8x32xf32>
    %173 = vector.extract_strided_slice %8 {offsets = [7, 0, 0], sizes = [1, 8, 128], strides = [1, 1, 1]} : vector<8x8x128xf32> to vector<1x8x128xf32>
    %174 = vector.shape_cast %173 : vector<1x8x128xf32> to vector<8x128xf32>
    %175 = arith.truncf %172 : vector<8x32xf32> to vector<8x32xbf16>
    %cst_38 = arith.constant dense<0.000000e+00> : vector<8x128xf32>
    %176 = tpu.matmul %175, %9, %cst_38 {dimension_numbers = #tpu.dot_dimension_numbers<[1], [0], [0], [1], [0, 0, 1, 1], [], []>} : vector<8x32xbf16>, vector<32x128xbf16>, vector<8x128xf32> -> vector<8x128xf32>
    %177 = arith.addf %174, %176 : vector<8x128xf32>
    %178 = arith.negf %177 : vector<8x128xf32>
    %179 = math.exp %178 : vector<8x128xf32>
    %cst_39 = arith.constant 1.000000e+00 : f32
    %180 = vector.broadcast %cst_39 : f32 to vector<8x128xf32>
    %181 = arith.addf %180, %179 : vector<8x128xf32>
    %182 = arith.divf %180, %181 : vector<8x128xf32>
    %183 = vector.extract_strided_slice %182 {offsets = [0, 0], sizes = [8, 32], strides = [1, 1]} : vector<8x128xf32> to vector<8x32xf32>
    %184 = vector.extract_strided_slice %182 {offsets = [0, 32], sizes = [8, 32], strides = [1, 1]} : vector<8x128xf32> to vector<8x32xf32>
    %185 = vector.extract_strided_slice %182 {offsets = [0, 64], sizes = [8, 32], strides = [1, 1]} : vector<8x128xf32> to vector<8x32xf32>
    %cst_40 = arith.constant 2.000000e+00 : f32
    %186 = vector.broadcast %cst_40 : f32 to vector<8x32xf32>
    %187 = arith.mulf %186, %185 : vector<8x32xf32>
    %cst_41 = arith.constant 1.000000e+00 : f32
    %188 = vector.broadcast %cst_41 : f32 to vector<8x32xf32>
    %189 = arith.subf %187, %188 : vector<8x32xf32>
    %190 = vector.extract_strided_slice %182 {offsets = [0, 96], sizes = [8, 32], strides = [1, 1]} : vector<8x128xf32> to vector<8x32xf32>
    %191 = arith.mulf %184, %170 : vector<8x32xf32>
    %192 = arith.mulf %183, %189 : vector<8x32xf32>
    %193 = arith.addf %191, %192 : vector<8x32xf32>
    %194 = math.tanh %193 : vector<8x32xf32>
    %195 = arith.mulf %190, %194 : vector<8x32xf32>
    %196 = arith.truncf %195 : vector<8x32xf32> to vector<8x32xbf16>
    %c0_42 = arith.constant 0 : index
    %c0_43 = arith.constant 0 : index
    %197 = vector.load %arg5[%c0_42, %c0_43] : memref<32x32xbf16, #tpu.memory_space<vmem>>, vector<32x32xbf16>
    %cst_44 = arith.constant dense<0.000000e+00> : vector<8x32xf32>
    %198 = tpu.matmul %196, %197, %cst_44 {dimension_numbers = #tpu.dot_dimension_numbers<[1], [0], [0], [1], [0, 0, 1, 1], [], []>} : vector<8x32xbf16>, vector<32x32xbf16>, vector<8x32xf32> -> vector<8x32xf32>
    %c0_45 = arith.constant 0 : index
    %c0_46 = arith.constant 0 : index
    %199 = vector.load %arg6[%c0_45, %c0_46] : memref<1x32xf32, #tpu.memory_space<vmem>>, vector<1x32xf32>
    %200 = vector.broadcast %199 : vector<1x32xf32> to vector<8x32xf32>
    %201 = arith.addf %198, %200 : vector<8x32xf32>
    %cst_47 = arith.constant 0.000000e+00 : f32
    %202 = vector.broadcast %cst_47 : f32 to vector<8x32xf32>
    %203 = arith.maximumf %201, %202 : vector<8x32xf32>
    %c0_48 = arith.constant 0 : index
    %c0_49 = arith.constant 0 : index
    %204 = vector.load %arg7[%c0_48, %c0_49] : memref<1x32xf32, #tpu.memory_space<vmem>>, vector<1x32xf32>
    %205 = vector.broadcast %204 : vector<1x32xf32> to vector<8x32xf32>
    %206 = arith.mulf %203, %205 : vector<8x32xf32>
    %cst_50 = arith.constant dense<0.000000e+00> : vector<8xf32>
    %207 = vector.multi_reduction <add>, %206, %cst_50 [1] : vector<8x32xf32> to vector<8xf32>
    %208 = vector.shape_cast %207 : vector<8xf32> to vector<8x1xf32>
    %c0_51 = arith.constant 0 : index
    %c0_52 = arith.constant 0 : index
    %209 = vector.load %arg8[%c0_51, %c0_52] : memref<1x1xf32, #tpu.memory_space<vmem>>, vector<1x1xf32>
    %210 = vector.broadcast %209 : vector<1x1xf32> to vector<8x1xf32>
    %211 = arith.addf %208, %210 : vector<8x1xf32>
    %212 = vector.shape_cast %211 : vector<8x1xf32> to vector<8x1xf32>
    %213 = vector.broadcast %212 : vector<8x1xf32> to vector<8x128xf32>
    %c0_53 = arith.constant 0 : index
    %c0_54 = arith.constant 0 : index
    %214 = vector.load %arg9[%c0_53, %c0_54] : memref<8x128xf32, #tpu.memory_space<vmem>>, vector<8x128xf32>
    tpu.vector_store %arg9[%c0_53, %c0_54], %213 {strides = array<i32>} : memref<8x128xf32, #tpu.memory_space<vmem>>, vector<8x128xf32>,
    return
  }
  func.func @transform_0(%arg0: i32) -> (i32, i32, i32) {
    %c0_i32 = arith.constant 0 : i32
    %c0_i32_0 = arith.constant 0 : i32
    %c0_i32_1 = arith.constant 0 : i32
    return %c0_i32, %arg0, %c0_i32_0 : i32, i32, i32
  }
  func.func @transform_1(%arg0: i32) -> (i32, i32) {
    %c0_i32 = arith.constant 0 : i32
    %c0_i32_0 = arith.constant 0 : i32
    %c0_i32_1 = arith.constant 0 : i32
    return %c0_i32, %c0_i32_0 : i32, i32
  }
  func.func @transform_2(%arg0: i32) -> (i32, i32) {
    %c0_i32 = arith.constant 0 : i32
    %c0_i32_0 = arith.constant 0 : i32
    %c0_i32_1 = arith.constant 0 : i32
    return %c0_i32, %c0_i32_0 : i32, i32
  }
  func.func @transform_3(%arg0: i32) -> (i32, i32) {
    %c0_i32 = arith.constant 0 : i32
    %c0_i32_0 = arith.constant 0 : i32
    %c0_i32_1 = arith.constant 0 : i32
    return %c0_i32, %c0_i32_0 : i32, i32
  }
  func.func @transform_4(%arg0: i32) -> (i32, i32) {
    %c0_i32 = arith.constant 0 : i32
    %c0_i32_0 = arith.constant 0 : i32
    %c0_i32_1 = arith.constant 0 : i32
    return %c0_i32, %c0_i32_0 : i32, i32
  }
  func.func @transform_5(%arg0: i32) -> (i32, i32) {
    %c0_i32 = arith.constant 0 : i32
    %c0_i32_0 = arith.constant 0 : i32
    %c0_i32_1 = arith.constant 0 : i32
    return %c0_i32, %c0_i32_0 : i32, i32
  }
  func.func @transform_6(%arg0: i32) -> (i32, i32) {
    %c0_i32 = arith.constant 0 : i32
    %c0_i32_0 = arith.constant 0 : i32
    %c0_i32_1 = arith.constant 0 : i32
    return %c0_i32, %c0_i32_0 : i32, i32
  }
  func.func @transform_7(%arg0: i32) -> (i32, i32) {
    %c0_i32 = arith.constant 0 : i32
    %c0_i32_0 = arith.constant 0 : i32
    %c0_i32_1 = arith.constant 0 : i32
    return %c0_i32, %c0_i32_0 : i32, i32
  }
  func.func @transform_8(%arg0: i32) -> (i32, i32) {
    %c0_i32 = arith.constant 0 : i32
    %c0_i32_0 = arith.constant 0 : i32
    return %arg0, %c0_i32 : i32, i32
  }
}

</mosaic_0001>

<llo_original>
// kernel: tpu_custom_call.1
$region0: #{tpu_custom_call.1}
  #allocation0 [shape = 'u32[]', space=smem, size = 0x4, offset = 0x4, fixed_abs, tag = 'smem constant byte address 0x4 - core index']
  #allocation1 [shape = 'u32[72,128]{1,0:T(1,128)}', space=vmem, size = 0x9000, scoped, tag = 'internal scratch']
  #allocation2 [shape = 'f32[1,1]{1,0:T(1,128)S(1)}', space=vmem, size = 0x200, scoped, tag = 'scoped memory for tpu_custom_call.1']
  %s0 = inlined_call_operand.hbm [shape: f32[8,8,16], index: 0, kind: input, shape index: {}]
  %s1 = inlined_call_operand.hbm [shape: bf16[16,128], index: 1, kind: input, shape index: {}]
  %s2 = inlined_call_operand.hbm [shape: bf16[32,128], index: 2, kind: input, shape index: {}]
  %s3 = inlined_call_operand.vmem [shape: f32[1,128], index: 3, kind: input, shape index: {}]
  %s4 = inlined_call_operand.hbm [shape: bf16[32,32], index: 4, kind: input, shape index: {}]
  %s5 = inlined_call_operand.vmem [shape: f32[1,32], index: 5, kind: input, shape index: {}]
  %s6 = inlined_call_operand.vmem [shape: f32[1,32], index: 6, kind: input, shape index: {}]
  %s7 = inlined_call_operand.<no memory space> [shape: f32[1,1], index: 7, kind: input, shape index: {}]
  %s8 = inlined_call_operand.hbm [shape: f32[8,128], index: 8, kind: output, shape index: {}]
  %s9 = sld [smem:[#allocation0]]
  $region58: #{tpu_custom_call.1} parent=0
    _
  %s11 = ssub.s32 1, %s9
  %s12 = scalar_select 0, %s11, %s9
  %v13 = vstv %s7
  %14 = vst [vmem:[#allocation2] sm:$0x1] %v13
  $region1: #{tpu_custom_call.1} parent=0
    #allocation3 [shape = 'u8[32768]{0}', space=vmem, size = 0x8000, scoped, tag = 'input window, operand 0, single buffered']
    #allocation4 [shape = 's32[1]{0}', space=sflag, size = 0x4, scoped, tag = 'scoped memory for tpu_custom_call.1']
    #allocation5 [shape = 's32[1]{0}', space=sflag, size = 0x4, scoped, tag = 'scoped memory for tpu_custom_call.1']
    #allocation6 [shape = 'u8[4096]{0}', space=vmem, size = 0x1000, scoped, tag = 'input window, operand 1, single buffered']
    #allocation7 [shape = 's32[1]{0}', space=sflag, size = 0x4, scoped, tag = 'scoped memory for tpu_custom_call.1']
    #allocation8 [shape = 'u8[8192]{0}', space=vmem, size = 0x2000, scoped, tag = 'input window, operand 2, single buffered']
    #allocation9 [shape = 'u8[8192]{0}', space=vmem, size = 0x2000, scoped, tag = 'input window, operand 4, single buffered']
    #allocation10 [shape = 's32[1]{0}', space=sflag, size = 0x4, scoped, tag = 'scoped memory for tpu_custom_call.1']
    #allocation11 [shape = 'u8[4096]{0}', space=vmem, size = 0x1000, scoped, tag = 'output window, operand 0, single buffered']
    %15 = vsyncpa [#allocation4], 0
    %16 = vsyncpa [#allocation7], 0
    %17 = vsyncpa [#allocation10], 0
    %18 = vsyncpa [#allocation5], 0
    // Predicated region
    $region2: #{tpu_custom_call.1} parent=1 // pred_check
      _
    $region3: #{tpu_custom_call.1} parent=1 // pred_check_branch
      %20 = sbr.rel (0) target = $region5
    $region4: #{tpu_custom_call.1} parent=1 // pred_region
      %22 = vsyncadd [#allocation4], 0
      %s23 = sshll.u32 %s0, 4
      %s24 = int_to_ptr.hbm [resolvable:$true] %s23
      %s25 = sshll.u32 [#allocation3], 4
      %s26 = int_to_ptr.vmem [resolvable:$true] %s25
      %31 = dma.hbm_to_vmem [thread:$0]  %s24, 1024, %s26, [#allocation4], 128, 128, 8
    $region5: #{tpu_custom_call.1} parent=1 // pred_fallthru
      _
    // Predicated region
    $region6: #{tpu_custom_call.1} parent=1 // pred_check
      _
    $region7: #{tpu_custom_call.1} parent=1 // pred_check_branch
      %33 = sbr.rel (0) target = $region9
    $region8: #{tpu_custom_call.1} parent=1 // pred_region
      %35 = vsyncadd [#allocation7], 0
      %s36 = sshll.u32 %s1, 4
      %s37 = int_to_ptr.hbm [resolvable:$true] %s36
      %s38 = sshll.u32 [#allocation6], 4
      %s39 = int_to_ptr.vmem [resolvable:$true] %s38
      %44 = dma.hbm_to_vmem [thread:$0]  %s37, 128, %s39, [#allocation7], 64, 64, 4
    $region9: #{tpu_custom_call.1} parent=1 // pred_fallthru
      _
    // Predicated region
    $region10: #{tpu_custom_call.1} parent=1 // pred_check
      _
    $region11: #{tpu_custom_call.1} parent=1 // pred_check_branch
      %46 = sbr.rel (0) target = $region13
    $region12: #{tpu_custom_call.1} parent=1 // pred_region
      %48 = vsyncadd [#allocation7], 0
      %s49 = sshll.u32 %s2, 4
      %s50 = int_to_ptr.hbm [resolvable:$true] %s49
      %s51 = sshll.u32 [#allocation8], 4
      %s52 = int_to_ptr.vmem [resolvable:$true] %s51
      %57 = dma.hbm_to_vmem [thread:$0]  %s50, 256, %s52, [#allocation7], 64, 64, 4
    $region13: #{tpu_custom_call.1} parent=1 // pred_fallthru
      _
    // Predicated region
    $region14: #{tpu_custom_call.1} parent=1 // pred_check
      _
    $region15: #{tpu_custom_call.1} parent=1 // pred_check_branch
      %59 = sbr.rel (0) target = $region17
    $region16: #{tpu_custom_call.1} parent=1 // pred_region
      _
    $region17: #{tpu_custom_call.1} parent=1 // pred_fallthru
      _
    // Predicated region
    $region18: #{tpu_custom_call.1} parent=1 // pred_check
      _
    $region19: #{tpu_custom_call.1} parent=1 // pred_check_branch
      %61 = sbr.rel (0) target = $region21
    $region20: #{tpu_custom_call.1} parent=1 // pred_region
      %63 = vsyncadd [#allocation10], 0
      %s64 = sshll.u32 %s4, 4
      %s65 = int_to_ptr.hbm [resolvable:$true] %s64
      %s66 = sshll.u32 [#allocation9], 4
      %s67 = int_to_ptr.vmem [resolvable:$true] %s66
      %72 = dma.hbm_to_vmem [thread:$0]  %s65, 256, %s67, [#allocation10], 64, 64, 4
    $region21: #{tpu_custom_call.1} parent=1 // pred_fallthru
      _
    // Predicated region
    $region22: #{tpu_custom_call.1} parent=1 // pred_check
      _
    $region23: #{tpu_custom_call.1} parent=1 // pred_check_branch
      %74 = sbr.rel (0) target = $region25
    $region24: #{tpu_custom_call.1} parent=1 // pred_region
      _
    $region25: #{tpu_custom_call.1} parent=1 // pred_fallthru
      _
    // Predicated region
    $region26: #{tpu_custom_call.1} parent=1 // pred_check
      _
    $region27: #{tpu_custom_call.1} parent=1 // pred_check_branch
      %76 = sbr.rel (0) target = $region29
    $region28: #{tpu_custom_call.1} parent=1 // pred_region
      _
    $region29: #{tpu_custom_call.1} parent=1 // pred_fallthru
      _
    // Predicated region
    $region30: #{tpu_custom_call.1} parent=1 // pred_check
      _
    $region31: #{tpu_custom_call.1} parent=1 // pred_check_branch
      %78 = sbr.rel (0) target = $region33
    $region32: #{tpu_custom_call.1} parent=1 // pred_region
      _
    $region33: #{tpu_custom_call.1} parent=1 // pred_fallthru
      _
    // Predicated region
    $region34: #{tpu_custom_call.1} parent=1 // pred_check
      _
    $region35: #{tpu_custom_call.1} parent=1 // pred_check_branch
      %80 = sbr.rel (0) target = $region37
    $region36: #{tpu_custom_call.1} parent=1 // pred_region
      %82 = dma.done [#allocation4], 1024
    $region37: #{tpu_custom_call.1} parent=1 // pred_fallthru
      _
    // Predicated region
    $region38: #{tpu_custom_call.1} parent=1 // pred_check
      _
    $region39: #{tpu_custom_call.1} parent=1 // pred_check_branch
      %84 = sbr.rel (0) target = $region41
    $region40: #{tpu_custom_call.1} parent=1 // pred_region
      %86 = dma.done [#allocation7], 128
    $region41: #{tpu_custom_call.1} parent=1 // pred_fallthru
      _
    // Predicated region
    $region42: #{tpu_custom_call.1} parent=1 // pred_check
      _
    $region43: #{tpu_custom_call.1} parent=1 // pred_check_branch
      %88 = sbr.rel (0) target = $region45
    $region44: #{tpu_custom_call.1} parent=1 // pred_region
      %90 = dma.done [#allocation7], 256
    $region45: #{tpu_custom_call.1} parent=1 // pred_fallthru
      _
    // Predicated region
    $region46: #{tpu_custom_call.1} parent=1 // pred_check
      _
    $region47: #{tpu_custom_call.1} parent=1 // pred_check_branch
      %92 = sbr.rel (0) target = $region49
    $region48: #{tpu_custom_call.1} parent=1 // pred_region
      %94 = dma.done [#allocation10], 256
    $region49: #{tpu_custom_call.1} parent=1 // pred_fallthru
      _
    %v96 = vld [vmem:[#allocation3] sm:$0xff]
    %v97 = vld [vmem:[#allocation3 + $0x8] sm:$0xff]
    %v98 = vld [vmem:[#allocation3 + $0x10] sm:$0xff]
    %v99 = vld [vmem:[#allocation3 + $0x18] sm:$0xff]
    %v100 = vld [vmem:[#allocation3 + $0x20] sm:$0xff]
    %v101 = vld [vmem:[#allocation3 + $0x28] sm:$0xff]
    %v102 = vld [vmem:[#allocation3 + $0x30] sm:$0xff]
    %v103 = vld [vmem:[#allocation3 + $0x38] sm:$0xff]
    %v104 = vpack.c.bf16 %v97, %v96
    %v105 = vpack.c.bf16 %v99, %v98
    %v106 = vpack.c.bf16 %v101, %v100
    %v107 = vpack.c.bf16 %v103, %v102
    %v108 = vld [vmem:[#allocation6] sm:$0xf]
    %v109 = vld [vmem:[#allocation6 + $0x4] sm:$0xf]
    %v110 = vld [vmem:[%s3] sm:$0x1]
    %v112 = vperm.slane %v110, 0
    %v116 = vunpack.c.l.b16 %v108
    %v117 = vunpack.c.l.b16 %v109
    %v118 = vpack.c.b16 %v117, %v116
    %vm120 = vcmask 130048
    %v122 = vsel %vm120, %v104, 0
    %v125 = vsel %vm120, %v105, 0
    %v128 = vsel %vm120, %v106, 0
    %v131 = vsel %vm120, %v107, 0
    %133 = vmatpush.bf16.msra.mxu0 0
    %134 = vmatpush.bf16.msra.mxu0 0
    %135 = vmatpush.bf16.msra.mxu0 0
    %136 = vmatpush.bf16.msra.mxu0 0
    %137 = vmatpush.bf16.msra.mxu0 0
    %138 = vmatpush.bf16.msra.mxu0 0
    %139 = vmatpush.bf16.msra.mxu0 0
    %140 = vmatpush.bf16.msra.mxu0 %v118
    %141 = vmatmul.bf16.gmra.mxu0 %v122
    %v142 = vpop.f32.mrf.mxu0
    %v143 = vadd.f32 %v112, %v142
    %v144 = vpop.f32.mrf.mxu0
    %v145 = vadd.f32 %v112, %v144
    %146 = vmatmul.bf16.gmra.mxu0 %v125
    %v147 = vpop.f32.mrf.mxu0
    %v148 = vadd.f32 %v112, %v147
    %v149 = vpop.f32.mrf.mxu0
    %v150 = vadd.f32 %v112, %v149
    %151 = vmatmul.bf16.gmra.mxu0 %v128
    %v152 = vpop.f32.mrf.mxu0
    %v153 = vadd.f32 %v112, %v152
    %v154 = vpop.f32.mrf.mxu0
    %v155 = vadd.f32 %v112, %v154
    %156 = vmatmul.bf16.gmra.mxu0 %v131
    %v157 = vpop.f32.mrf.mxu0
    %v158 = vadd.f32 %v112, %v157
    %v159 = vpop.f32.mrf.mxu0
    %v160 = vadd.f32 %v112, %v159
    %161 = vdwg.mxu0
    %v162 = vld [vmem:[#allocation8] sm:$0xf]
    %v163 = vld [vmem:[#allocation8 + $0x4] sm:$0xf]
    %v164 = vld [vmem:[#allocation8 + $0x8] sm:$0xf]
    %v165 = vld [vmem:[#allocation8 + $0xc] sm:$0xf]
    %v170 = vunpack.c.l.b16 %v162
    %v171 = vunpack.c.l.b16 %v163
    %v172 = vunpack.c.l.b16 %v164
    %v173 = vunpack.c.l.b16 %v165
    %v174 = vpack.c.b16 %v171, %v170
    %v175 = vpack.c.b16 %v173, %v172
    %vm178 = vcmask 261120
    %v180 = vsel %vm178, 0, 0
    %182 = vmatpush.bf16.msra.mxu0 0
    %183 = vmatpush.bf16.msra.mxu0 0
    %184 = vmatpush.bf16.msra.mxu0 0
    %185 = vmatpush.bf16.msra.mxu0 0
    %186 = vmatpush.bf16.msra.mxu0 0
    %187 = vmatpush.bf16.msra.mxu0 0
    %188 = vmatpush.bf16.msra.mxu0 %v175
    %189 = vmatpush.bf16.msra.mxu0 %v174
    %190 = vmatmul.bf16.gmra.mxu0 %v180
    %v191 = vpop.f32.mrf.mxu0
    %v192 = vadd.f32 0.0, %v191
    %v193 = vpop.f32.mrf.mxu0
    %194 = vdwg.mxu0
    %v195 = vadd.f32 %v143, %v192
    %v196 = vxor.u32 %v195, 2147483648
    %v197 = vmul.f32 %v196, 1.442695
    %v198 = vpow.pop %v197
    %v199 = vadd.f32 %v198, 1.0
    %v200 = vrcp.pop %v199
    %v201 = vmul.f32 %v199, %v200
    %v202 = vsub.f32 1.0, %v201
    %v203 = vmul.f32 %v200, %v202
    %v204 = vadd.f32 %v200, %v203
    %vm205 = vweird.f32 %v199
    %vm206 = vweird.f32 %v200
    %vm207 = vmor %vm205, %vm206
    %v208 = vsel %vm207, %v200, %v204
    %v209 = vand.u32 2147483647, %v199
    %vm210 = vcmp.eq.f32.partialorder %v209, 8.507059e+37
    %v211 = vand.u32 %v199, 2147483648
    %v212 = vor.u32 1.1754944e-38, %v211
    %v213 = vsel %vm210, %v212, %v208
    %v214 = vmul.f32 1.0, %v213
    %v215 = vmul.f32 %v214, 2.0
    %v216 = vsub.f32 %v215, 1.0
    %v217 = vmul.f32 %v214, 0.0
    %219 = vrot.lane.b32.xlu0 %v216, 64
    %v220 = vpop.permute.xlu0 %219
    %v222 = vmul.f32 %v214, %v220
    %224 = vrot.lane.b32.xlu0 %v222, 32
    %v225 = vpop.permute.xlu0 %224
    %v227 = vadd.f32 %v217, %v225
    %v228 = vtanh.pop %v227
    %230 = vrot.lane.b32.xlu0 %v228, 64
    %v231 = vpop.permute.xlu0 %230
    %v233 = vmul.f32 %v214, %v231
    %v234 = vpack.c.bf16 %v233, %v233
    %236 = vrot.lane.b32.xlu0 %v234, 32
    %v237 = vpop.permute.xlu0 %236
    %v239 = vsel %vm178, %v237, 0
    %241 = vmatpush.bf16.msra.mxu0 0
    %242 = vmatpush.bf16.msra.mxu0 0
    %243 = vmatpush.bf16.msra.mxu0 0
    %244 = vmatpush.bf16.msra.mxu0 0
    %245 = vmatpush.bf16.msra.mxu0 0
    %246 = vmatpush.bf16.msra.mxu0 0
    %247 = vmatpush.bf16.msra.mxu0 %v175
    %248 = vmatpush.bf16.msra.mxu0 %v174
    %249 = vmatmul.bf16.gmra.mxu0 %v239
    %v250 = vpop.f32.mrf.mxu0
    %v251 = vadd.f32 0.0, %v250
    %v252 = vpop.f32.mrf.mxu0
    %253 = vdwg.mxu0
    %v254 = vadd.f32 %v145, %v251
    %v255 = vxor.u32 %v254, 2147483648
    %v256 = vmul.f32 %v255, 1.442695
    %v257 = vpow.pop %v256
    %v258 = vadd.f32 %v257, 1.0
    %v259 = vrcp.pop %v258
    %v260 = vmul.f32 %v258, %v259
    %v261 = vsub.f32 1.0, %v260
    %v262 = vmul.f32 %v259, %v261
    %v263 = vadd.f32 %v259, %v262
    %vm264 = vweird.f32 %v258
    %vm265 = vweird.f32 %v259
    %vm266 = vmor %vm264, %vm265
    %v267 = vsel %vm266, %v259, %v263
    %v268 = vand.u32 2147483647, %v258
    %vm269 = vcmp.eq.f32.partialorder %v268, 8.507059e+37
    %v270 = vand.u32 %v258, 2147483648
    %v271 = vor.u32 1.1754944e-38, %v270
    %v272 = vsel %vm269, %v271, %v267
    %v273 = vmul.f32 1.0, %v272
    %v274 = vmul.f32 %v273, 2.0
    %v275 = vsub.f32 %v274, 1.0
    %v276 = vmul.f32 %v273, %v227
    %278 = vrot.lane.b32.xlu0 %v275, 64
    %v279 = vpop.permute.xlu0 %278
    %v281 = vmul.f32 %v273, %v279
    %283 = vrot.lane.b32.xlu0 %v281, 32
    %v284 = vpop.permute.xlu0 %283
    %v286 = vadd.f32 %v276, %v284
    %v287 = vtanh.pop %v286
    %289 = vrot.lane.b32.xlu0 %v287, 64
    %v290 = vpop.permute.xlu0 %289
    %v292 = vmul.f32 %v273, %v290
    %v293 = vpack.c.bf16 %v292, %v292
    %295 = vrot.lane.b32.xlu0 %v293, 32
    %v296 = vpop.permute.xlu0 %295
    %v298 = vsel %vm178, %v296, 0
    %300 = vmatpush.bf16.msra.mxu0 0
    %301 = vmatpush.bf16.msra.mxu0 0
    %302 = vmatpush.bf16.msra.mxu0 0
    %303 = vmatpush.bf16.msra.mxu0 0
    %304 = vmatpush.bf16.msra.mxu0 0
    %305 = vmatpush.bf16.msra.mxu0 0
    %306 = vmatpush.bf16.msra.mxu0 %v175
    %307 = vmatpush.bf16.msra.mxu0 %v174
    %308 = vmatmul.bf16.gmra.mxu0 %v298
    %v309 = vpop.f32.mrf.mxu0
    %v310 = vadd.f32 0.0, %v309
    %v311 = vpop.f32.mrf.mxu0
    %312 = vdwg.mxu0
    %v313 = vadd.f32 %v148, %v310
    %v314 = vxor.u32 %v313, 2147483648
    %v315 = vmul.f32 %v314, 1.442695
    %v316 = vpow.pop %v315
    %v317 = vadd.f32 %v316, 1.0
    %v318 = vrcp.pop %v317
    %v319 = vmul.f32 %v317, %v318
    %v320 = vsub.f32 1.0, %v319
    %v321 = vmul.f32 %v318, %v320
    %v322 = vadd.f32 %v318, %v321
    %vm323 = vweird.f32 %v317
    %vm324 = vweird.f32 %v318
    %vm325 = vmor %vm323, %vm324
    %v326 = vsel %vm325, %v318, %v322
    %v327 = vand.u32 2147483647, %v317
    %vm328 = vcmp.eq.f32.partialorder %v327, 8.507059e+37
    %v329 = vand.u32 %v317, 2147483648
    %v330 = vor.u32 1.1754944e-38, %v329
    %v331 = vsel %vm328, %v330, %v326
    %v332 = vmul.f32 1.0, %v331
    %v333 = vmul.f32 %v332, 2.0
    %v334 = vsub.f32 %v333, 1.0
    %v335 = vmul.f32 %v332, %v286
    %337 = vrot.lane.b32.xlu0 %v334, 64
    %v338 = vpop.permute.xlu0 %337
    %v340 = vmul.f32 %v332, %v338
    %342 = vrot.lane.b32.xlu0 %v340, 32
    %v343 = vpop.permute.xlu0 %342
    %v345 = vadd.f32 %v335, %v343
    %v346 = vtanh.pop %v345
    %348 = vrot.lane.b32.xlu0 %v346, 64
    %v349 = vpop.permute.xlu0 %348
    %v351 = vmul.f32 %v332, %v349
    %v352 = vpack.c.bf16 %v351, %v351
    %354 = vrot.lane.b32.xlu0 %v352, 32
    %v355 = vpop.permute.xlu0 %354
    %v357 = vsel %vm178, %v355, 0
    %359 = vmatpush.bf16.msra.mxu0 0
    %360 = vmatpush.bf16.msra.mxu0 0
    %361 = vmatpush.bf16.msra.mxu0 0
    %362 = vmatpush.bf16.msra.mxu0 0
    %363 = vmatpush.bf16.msra.mxu0 0
    %364 = vmatpush.bf16.msra.mxu0 0
    %365 = vmatpush.bf16.msra.mxu0 %v175
    %366 = vmatpush.bf16.msra.mxu0 %v174
    %367 = vmatmul.bf16.gmra.mxu0 %v357
    %v368 = vpop.f32.mrf.mxu0
    %v369 = vadd.f32 0.0, %v368
    %v370 = vpop.f32.mrf.mxu0
    %371 = vdwg.mxu0
    %v372 = vadd.f32 %v150, %v369
    %v373 = vxor.u32 %v372, 2147483648
    %v374 = vmul.f32 %v373, 1.442695
    %v375 = vpow.pop %v374
    %v376 = vadd.f32 %v375, 1.0
    %v377 = vrcp.pop %v376
    %v378 = vmul.f32 %v376, %v377
    %v379 = vsub.f32 1.0, %v378
    %v380 = vmul.f32 %v377, %v379
    %v381 = vadd.f32 %v377, %v380
    %vm382 = vweird.f32 %v376
    %vm383 = vweird.f32 %v377
    %vm384 = vmor %vm382, %vm383
    %v385 = vsel %vm384, %v377, %v381
    %v386 = vand.u32 2147483647, %v376
    %vm387 = vcmp.eq.f32.partialorder %v386, 8.507059e+37
    %v388 = vand.u32 %v376, 2147483648
    %v389 = vor.u32 1.1754944e-38, %v388
    %v390 = vsel %vm387, %v389, %v385
    %v391 = vmul.f32 1.0, %v390
    %v392 = vmul.f32 %v391, 2.0
    %v393 = vsub.f32 %v392, 1.0
    %v394 = vmul.f32 %v391, %v345
    %396 = vrot.lane.b32.xlu0 %v393, 64
    %v397 = vpop.permute.xlu0 %396
    %v399 = vmul.f32 %v391, %v397
    %401 = vrot.lane.b32.xlu0 %v399, 32
    %v402 = vpop.permute.xlu0 %401
    %v404 = vadd.f32 %v394, %v402
    %v405 = vtanh.pop %v404
    %407 = vrot.lane.b32.xlu0 %v405, 64
    %v408 = vpop.permute.xlu0 %407
    %v410 = vmul.f32 %v391, %v408
    %v411 = vpack.c.bf16 %v410, %v410
    %413 = vrot.lane.b32.xlu0 %v411, 32
    %v414 = vpop.permute.xlu0 %413
    %v416 = vsel %vm178, %v414, 0
    %418 = vmatpush.bf16.msra.mxu0 0
    %419 = vmatpush.bf16.msra.mxu0 0
    %420 = vmatpush.bf16.msra.mxu0 0
    %421 = vmatpush.bf16.msra.mxu0 0
    %422 = vmatpush.bf16.msra.mxu0 0
    %423 = vmatpush.bf16.msra.mxu0 0
    %424 = vmatpush.bf16.msra.mxu0 %v175
    %425 = vmatpush.bf16.msra.mxu0 %v174
    %426 = vmatmul.bf16.gmra.mxu0 %v416
    %v427 = vpop.f32.mrf.mxu0
    %v428 = vadd.f32 0.0, %v427
    %v429 = vpop.f32.mrf.mxu0
    %430 = vdwg.mxu0
    %v431 = vadd.f32 %v153, %v428
    %v432 = vxor.u32 %v431, 2147483648
    %v433 = vmul.f32 %v432, 1.442695
    %v434 = vpow.pop %v433
    %v435 = vadd.f32 %v434, 1.0
    %v436 = vrcp.pop %v435
    %v437 = vmul.f32 %v435, %v436
    %v438 = vsub.f32 1.0, %v437
    %v439 = vmul.f32 %v436, %v438
    %v440 = vadd.f32 %v436, %v439
    %vm441 = vweird.f32 %v435
    %vm442 = vweird.f32 %v436
    %vm443 = vmor %vm441, %vm442
    %v444 = vsel %vm443, %v436, %v440
    %v445 = vand.u32 2147483647, %v435
    %vm446 = vcmp.eq.f32.partialorder %v445, 8.507059e+37
    %v447 = vand.u32 %v435, 2147483648
    %v448 = vor.u32 1.1754944e-38, %v447
    %v449 = vsel %vm446, %v448, %v444
    %v450 = vmul.f32 1.0, %v449
    %v451 = vmul.f32 %v450, 2.0
    %v452 = vsub.f32 %v451, 1.0
    %v453 = vmul.f32 %v450, %v404
    %455 = vrot.lane.b32.xlu0 %v452, 64
    %v456 = vpop.permute.xlu0 %455
    %v458 = vmul.f32 %v450, %v456
    %460 = vrot.lane.b32.xlu0 %v458, 32
    %v461 = vpop.permute.xlu0 %460
    %v463 = vadd.f32 %v453, %v461
    %v464 = vtanh.pop %v463
    %466 = vrot.lane.b32.xlu0 %v464, 64
    %v467 = vpop.permute.xlu0 %466
    %v469 = vmul.f32 %v450, %v467
    %v470 = vpack.c.bf16 %v469, %v469
    %472 = vrot.lane.b32.xlu0 %v470, 32
    %v473 = vpop.permute.xlu0 %472
    %v475 = vsel %vm178, %v473, 0
    %477 = vmatpush.bf16.msra.mxu0 0
    %478 = vmatpush.bf16.msra.mxu0 0
    %479 = vmatpush.bf16.msra.mxu0 0
    %480 = vmatpush.bf16.msra.mxu0 0
    %481 = vmatpush.bf16.msra.mxu0 0
    %482 = vmatpush.bf16.msra.mxu0 0
    %483 = vmatpush.bf16.msra.mxu0 %v175
    %484 = vmatpush.bf16.msra.mxu0 %v174
    %485 = vmatmul.bf16.gmra.mxu0 %v475
    %v486 = vpop.f32.mrf.mxu0
    %v487 = vadd.f32 0.0, %v486
    %v488 = vpop.f32.mrf.mxu0
    %489 = vdwg.mxu0
    %v490 = vadd.f32 %v155, %v487
    %v491 = vxor.u32 %v490, 2147483648
    %v492 = vmul.f32 %v491, 1.442695
    %v493 = vpow.pop %v492
    %v494 = vadd.f32 %v493, 1.0
    %v495 = vrcp.pop %v494
    %v496 = vmul.f32 %v494, %v495
    %v497 = vsub.f32 1.0, %v496
    %v498 = vmul.f32 %v495, %v497
    %v499 = vadd.f32 %v495, %v498
    %vm500 = vweird.f32 %v494
    %vm501 = vweird.f32 %v495
    %vm502 = vmor %vm500, %vm501
    %v503 = vsel %vm502, %v495, %v499
    %v504 = vand.u32 2147483647, %v494
    %vm505 = vcmp.eq.f32.partialorder %v504, 8.507059e+37
    %v506 = vand.u32 %v494, 2147483648
    %v507 = vor.u32 1.1754944e-38, %v506
    %v508 = vsel %vm505, %v507, %v503
    %v509 = vmul.f32 1.0, %v508
    %v510 = vmul.f32 %v509, 2.0
    %v511 = vsub.f32 %v510, 1.0
    %v512 = vmul.f32 %v509, %v463
    %514 = vrot.lane.b32.xlu0 %v511, 64
    %v515 = vpop.permute.xlu0 %514
    %v517 = vmul.f32 %v509, %v515
    %519 = vrot.lane.b32.xlu0 %v517, 32
    %v520 = vpop.permute.xlu0 %519
    %v522 = vadd.f32 %v512, %v520
    %v523 = vtanh.pop %v522
    %525 = vrot.lane.b32.xlu0 %v523, 64
    %v526 = vpop.permute.xlu0 %525
    %v528 = vmul.f32 %v509, %v526
    %v529 = vpack.c.bf16 %v528, %v528
    %531 = vrot.lane.b32.xlu0 %v529, 32
    %v532 = vpop.permute.xlu0 %531
    %v534 = vsel %vm178, %v532, 0
    %536 = vmatpush.bf16.msra.mxu0 0
    %537 = vmatpush.bf16.msra.mxu0 0
    %538 = vmatpush.bf16.msra.mxu0 0
    %539 = vmatpush.bf16.msra.mxu0 0
    %540 = vmatpush.bf16.msra.mxu0 0
    %541 = vmatpush.bf16.msra.mxu0 0
    %542 = vmatpush.bf16.msra.mxu0 %v175
    %543 = vmatpush.bf16.msra.mxu0 %v174
    %544 = vmatmul.bf16.gmra.mxu0 %v534
    %v545 = vpop.f32.mrf.mxu0
    %v546 = vadd.f32 0.0, %v545
    %v547 = vpop.f32.mrf.mxu0
    %548 = vdwg.mxu0
    %v549 = vadd.f32 %v158, %v546
    %v550 = vxor.u32 %v549, 2147483648
    %v551 = vmul.f32 %v550, 1.442695
    %v552 = vpow.pop %v551
    %v553 = vadd.f32 %v552, 1.0
    %v554 = vrcp.pop %v553
    %v555 = vmul.f32 %v553, %v554
    %v556 = vsub.f32 1.0, %v555
    %v557 = vmul.f32 %v554, %v556
    %v558 = vadd.f32 %v554, %v557
    %vm559 = vweird.f32 %v553
    %vm560 = vweird.f32 %v554
    %vm561 = vmor %vm559, %vm560
    %v562 = vsel %vm561, %v554, %v558
    %v563 = vand.u32 2147483647, %v553
    %vm564 = vcmp.eq.f32.partialorder %v563, 8.507059e+37
    %v565 = vand.u32 %v553, 2147483648
    %v566 = vor.u32 1.1754944e-38, %v565
    %v567 = vsel %vm564, %v566, %v562
    %v568 = vmul.f32 1.0, %v567
    %v569 = vmul.f32 %v568, 2.0
    %v570 = vsub.f32 %v569, 1.0
    %v571 = vmul.f32 %v568, %v522
    %573 = vrot.lane.b32.xlu0 %v570, 64
    %v574 = vpop.permute.xlu0 %573
    %v576 = vmul.f32 %v568, %v574
    %578 = vrot.lane.b32.xlu0 %v576, 32
    %v579 = vpop.permute.xlu0 %578
    %v581 = vadd.f32 %v571, %v579
    %v582 = vtanh.pop %v581
    %584 = vrot.lane.b32.xlu0 %v582, 64
    %v585 = vpop.permute.xlu0 %584
    %v587 = vmul.f32 %v568, %v585
    %v588 = vpack.c.bf16 %v587, %v587
    %590 = vrot.lane.b32.xlu0 %v588, 32
    %v591 = vpop.permute.xlu0 %590
    %v593 = vsel %vm178, %v591, 0
    %595 = vmatpush.bf16.msra.mxu0 0
    %596 = vmatpush.bf16.msra.mxu0 0
    %597 = vmatpush.bf16.msra.mxu0 0
    %598 = vmatpush.bf16.msra.mxu0 0
    %599 = vmatpush.bf16.msra.mxu0 0
    %600 = vmatpush.bf16.msra.mxu0 0
    %601 = vmatpush.bf16.msra.mxu0 %v175
    %602 = vmatpush.bf16.msra.mxu0 %v174
    %603 = vmatmul.bf16.gmra.mxu0 %v593
    %v604 = vpop.f32.mrf.mxu0
    %v605 = vadd.f32 0.0, %v604
    %v606 = vpop.f32.mrf.mxu0
    %607 = vdwg.mxu0
    %v608 = vadd.f32 %v160, %v605
    %v609 = vxor.u32 %v608, 2147483648
    %v610 = vmul.f32 %v609, 1.442695
    %v611 = vpow.pop %v610
    %v612 = vadd.f32 %v611, 1.0
    %v613 = vrcp.pop %v612
    %v614 = vmul.f32 %v612, %v613
    %v615 = vsub.f32 1.0, %v614
    %v616 = vmul.f32 %v613, %v615
    %v617 = vadd.f32 %v613, %v616
    %vm618 = vweird.f32 %v612
    %vm619 = vweird.f32 %v613
    %vm620 = vmor %vm618, %vm619
    %v621 = vsel %vm620, %v613, %v617
    %v622 = vand.u32 2147483647, %v612
    %vm623 = vcmp.eq.f32.partialorder %v622, 8.507059e+37
    %v624 = vand.u32 %v612, 2147483648
    %v625 = vor.u32 1.1754944e-38, %v624
    %v626 = vsel %vm623, %v625, %v621
    %v627 = vmul.f32 1.0, %v626
    %v628 = vmul.f32 %v627, 2.0
    %v629 = vsub.f32 %v628, 1.0
    %v630 = vmul.f32 %v627, %v581
    %632 = vrot.lane.b32.xlu0 %v629, 64
    %v633 = vpop.permute.xlu0 %632
    %v635 = vmul.f32 %v627, %v633
    %637 = vrot.lane.b32.xlu0 %v635, 32
    %v638 = vpop.permute.xlu0 %637
    %v640 = vadd.f32 %v630, %v638
    %v641 = vtanh.pop %v640
    %643 = vrot.lane.b32.xlu0 %v641, 64
    %v644 = vpop.permute.xlu0 %643
    %v646 = vmul.f32 %v627, %v644
    %v647 = vpack.c.bf16 %v646, %v646
    %v648 = vld [vmem:[#allocation9] sm:$0xf]
    %v649 = vld [vmem:[#allocation9 + $0x4] sm:$0xf]
    %v650 = vld [vmem:[#allocation9 + $0x8] sm:$0xf]
    %v651 = vld [vmem:[#allocation9 + $0xc] sm:$0xf]
    %v652 = vld [vmem:[%s5] sm:$0x1]
    %v654 = vperm.slane %v652, 0
    %657 = vrot.lane.b32.xlu0 %v647, 32
    %v658 = vpop.permute.xlu0 %657
    %v663 = vunpack.c.l.b16 %v648
    %v664 = vunpack.c.l.b16 %v649
    %v665 = vunpack.c.l.b16 %v650
    %v666 = vunpack.c.l.b16 %v651
    %v667 = vpack.c.b16 %v664, %v663
    %v668 = vpack.c.b16 %v666, %v665
    %v672 = vsel %vm178, %v658, 0
    %674 = vmatpush.bf16.msra.mxu0 0
    %675 = vmatpush.bf16.msra.mxu0 0
    %676 = vmatpush.bf16.msra.mxu0 0
    %677 = vmatpush.bf16.msra.mxu0 0
    %678 = vmatpush.bf16.msra.mxu0 0
    %679 = vmatpush.bf16.msra.mxu0 0
    %680 = vmatpush.bf16.msra.mxu0 %v668
    %681 = vmatpush.bf16.msra.mxu0 %v667
    %682 = vmatmul.bf16.gmra.mxu0 %v672
    %v683 = vpop.f32.mrf.mxu0
    %v684 = vadd.f32 %v654, %v683
    %v685 = vpop.f32.mrf.mxu0
    %686 = vdwg.mxu0
    %v687 = vmax.f32 %v684, 0.0
    %v688 = vld [vmem:[%s6] sm:$0x1]
    %v690 = vperm.slane %v688, 0
    %v692 = vmul.f32 %v687, %v690
    %v693 = vsel %vm178, %v692, 0.0
    %694 = vadd.xlane.f32.xlu0 %v693
    %v695 = vpop.xlane.xlu0 %694
    %v696 = vld [vmem:[#allocation2] sm:$0x1]
    %v698 = vperm.slane %v696, 0
    %v700 = vadd.f32 %v695, %v698
    %702 = vset.pattern.permute.xlu0 0
    %703 = vperm.xlu0 %702, %v700
    %v704 = vpop.permute.xlu0 %703
    %706 = vst [vmem:[#allocation11] sm:$0xff] %v704
    // Predicated region
    $region50: #{tpu_custom_call.1} parent=1 // pred_check
      _
    $region51: #{tpu_custom_call.1} parent=1 // pred_check_branch
      %708 = sbr.rel (0) target = $region53
    $region52: #{tpu_custom_call.1} parent=1 // pred_region
      %710 = vsyncadd [#allocation5], 0
      %s712 = sshll.u32 [#allocation11], 4
      %s713 = int_to_ptr.vmem [resolvable:$true] %s712
      %s714 = sshll.u32 %s8, 4
      %s715 = int_to_ptr.hbm [resolvable:$true] %s714
      %717 = dma.vmem_to_hbm [thread:$0]  %s713, 128, %s715, [#allocation5]
    $region53: #{tpu_custom_call.1} parent=1 // pred_fallthru
      _
    // Predicated region
    $region54: #{tpu_custom_call.1} parent=1 // pred_check
      _
    $region55: #{tpu_custom_call.1} parent=1 // pred_check_branch
      %719 = sbr.rel (0) target = $region57
    $region56: #{tpu_custom_call.1} parent=1 // pred_region
      %721 = dma.done [#allocation5], 128
    $region57: #{tpu_custom_call.1} parent=1 // pred_fallthru
      _
    %722 = vsyncpa [#allocation4], 1
    %723 = vsyncpa [#allocation7], 1
    %724 = vsyncpa [#allocation10], 1
    %725 = vsyncpa [#allocation5], 1

</llo_original>
